<compile_context>
chip_gen: v6e
topology: v6e:2x2x1
jax: 0.10.0
libtpu: 0.0.40
codegen_flags: <defaults>
</compile_context>

<pallas_src>
import functools

import jax
import jax.numpy as jnp
from jax import lax
from jax.experimental import pallas as pl
from jax.experimental.pallas import tpu as pltpu


# dot_general dimension_numbers for 2-D tiles, keyed by layout.
#   'N' lhs tile: (tm, tk)   'T' lhs tile: (tk, tm)
#   'N' rhs tile: (tk, tn)   'T' rhs tile: (tn, tk)
_DNUMS = {
    "NN": (((1,), (0,)), ((), ())),
    "NT": (((1,), (1,)), ((), ())),
    "TN": (((0,), (0,)), ((), ())),
    "TT": (((0,), (1,)), ((), ())),
}


def _cdiv(a, b):
    return (a + b - 1) // b


def _round_up(x, m):
    return _cdiv(x, m) * m


def _vmem_capacity_bytes():
    try:
        return int(pltpu.get_tpu_info().vmem_capacity_bytes)
    except Exception:
        return 64 * 1024 * 1024  # conservative: assume v7x-style 64 MiB physical


def _config():
    """Generation-aware tile caps + VMEM limit (derived from physical VMEM)."""
    cap = _vmem_capacity_bytes()
    if cap >= 100 * 1024 * 1024:
        # v5e / v6e: 128 MiB VMEM -> spend it on bigger tiles / deeper K.
        return dict(cap_m=1024, cap_n=512, k_cap=1024, k_collapse=2048,
                    vmem_limit=96 * 1024 * 1024)
    # v7x (64 MiB physical) or unknown: bounded working set (<~16 MiB d-buffered).
    return dict(cap_m=1024, cap_n=512, k_cap=512, k_collapse=1024,
                vmem_limit=max(32 * 1024 * 1024, (cap * 3) // 4))


def _pick_mn_tile(dim, cap):
    """Output-tile size along an M/N dim.

    dim <= cap : one full-dim block (the 'equals full array dim' layout escape),
                 no padding, maximal arithmetic intensity.
    dim >  cap : multiple of 128 in [256, cap] minimizing cdiv(dim,t)*t (the
                 partial last block is masked on store, never padded in HBM);
                 ties go to the larger tile (fuller 256x256 MXU passes).
    """
    if dim <= cap:
        return dim
    best_t, best_total = 256, None
    for t in range(256, cap + 1, 128):
        total = _cdiv(dim, t) * t
        if best_total is None or total < best_total or (
                total == best_total and t > best_t):
            best_t, best_total = t, total
    return best_t


def _pick_k_tile(K, k_cap):
    """tk for the multi-step-K path: multiple of 128 in [512, k_cap] minimizing
    the zero-padded K extent; ties go to the deeper tile."""
    lo = min(512, k_cap)
    best_t, best_kp = lo, None
    for t in range(lo, k_cap + 1, 128):
        kp = _round_up(K, t)
        if best_kp is None or kp < best_kp or (kp == best_kp and t > best_t):
            best_t, best_kp = t, kp
    return best_t, best_kp


def _mm_single_kernel(dnums, a_ref, b_ref, o_ref):
    """Single K step: write the output tile directly (no accumulator)."""
    o_ref[...] = lax.dot_general(
        a_ref[...], b_ref[...], dimension_numbers=dnums,
        preferred_element_type=jnp.float32).astype(o_ref.dtype)


def _mm_acc_into_out_kernel(dnums, a_ref, b_ref, o_ref):
    """Multi-step K, f32 output: the output block is VMEM-resident across the
    (last, 'arbitrary') K grid axis, so accumulate directly into it — no
    scratch buffer and no final copy."""
    @pl.when(pl.program_id(2) == 0)
    def _():
        o_ref[...] = jnp.zeros_like(o_ref)

    o_ref[...] += lax.dot_general(
        a_ref[...], b_ref[...], dimension_numbers=dnums,
        preferred_element_type=jnp.float32)


def _mm_acc_scratch_kernel(dnums, a_ref, b_ref, o_ref, acc_ref):
    """Multi-step K with an f32 VMEM accumulator (non-f32 output dtypes)."""
    @pl.when(pl.program_id(2) == 0)
    def _():
        acc_ref[...] = jnp.zeros_like(acc_ref)

    acc_ref[...] += lax.dot_general(
        a_ref[...], b_ref[...], dimension_numbers=dnums,
        preferred_element_type=jnp.float32)

    @pl.when(pl.program_id(2) == pl.num_programs(2) - 1)
    def _():
        o_ref[...] = acc_ref[...].astype(o_ref.dtype)


def pallas_matmul(x, y, layout, *, cast_to_bf16=False):
    """2-D matmul with layout handled in-kernel (no HBM transpose round-trip).

    layout[0]=='T'  => x is supplied as (K, M)   else (M, K)
    layout[1]=='T'  => y is supplied as (N, K)   else (K, N)
    Returns (M, N).
    """
    assert layout in ("NN", "NT", "TN", "TT")
    assert x.ndim == 2 and y.ndim == 2

    out_dtype = jnp.result_type(x.dtype, y.dtype)
    # Opt-in fast path: bf16 MXU inputs with f32 accumulation (changes numerics).
    in_dtype = jnp.bfloat16 if cast_to_bf16 else out_dtype
    if x.dtype != in_dtype:
        x = x.astype(in_dtype)
    if y.dtype != in_dtype:
        y = y.astype(in_dtype)

    if layout[0] == "N":
        M, K = x.shape
    else:
        K, M = x.shape
    if layout[1] == "N":
        Kb, N = y.shape
    else:
        N, Kb = y.shape
    assert K == Kb, f"inner dims mismatch: {K} vs {Kb}"

    cfg = _config()
    tm = _pick_mn_tile(M, cfg["cap_m"])
    tn = _pick_mn_tile(N, cfg["cap_n"])

    # v7x has 2 TensorCores: guarantee >= 2 steps on the parallel (M, N) grid so
    # both cores get work (one extra grid step is negligible on 1-TC chips).
    if _cdiv(M, tm) * _cdiv(N, tn) == 1:
        if M >= 256:
            tm = _round_up(_cdiv(M, 2), 128)
        elif N >= 256:
            tn = _round_up(_cdiv(N, 2), 128)

    # K (contraction) axis: collapse entirely when small (single step, no pad
    # needed thanks to the full-dim block); otherwise deep K tiles with K
    # zero-padded to a tile multiple.  K padding is REQUIRED for correctness:
    # partial blocks are not zero-filled and garbage along K would corrupt every
    # output element (garbage along M/N is safe — masked on the partial store).
    if K <= cfg["k_collapse"]:
        tk, Kp = K, K
    else:
        tk, Kp = _pick_k_tile(K, cfg["k_cap"])

    if Kp != K:
        padk = Kp - K
        if layout[0] == "N":
            x = jnp.pad(x, ((0, 0), (0, padk)))
        else:
            x = jnp.pad(x, ((0, padk), (0, 0)))
        if layout[1] == "N":
            y = jnp.pad(y, ((0, padk), (0, 0)))
        else:
            y = jnp.pad(y, ((0, 0), (0, padk)))

    if layout[0] == "N":
        a_block, a_map = (tm, tk), (lambda i, j, k: (i, k))
    else:
        a_block, a_map = (tk, tm), (lambda i, j, k: (k, i))
    if layout[1] == "N":
        b_block, b_map = (tk, tn), (lambda i, j, k: (k, j))
    else:
        b_block, b_map = (tn, tk), (lambda i, j, k: (j, k))
    # TODO(synk): for 'T?' layouts Mosaic may transpose the A tile on the XLU each
    # K step; if profiling shows XLU-bound, pre-transpose A once in HBM instead.

    gm, gn, gk = _cdiv(M, tm), _cdiv(N, tn), Kp // tk
    grid = (gm, gn, gk)
    dnums = _DNUMS[layout]

    if gk == 1:
        kernel = functools.partial(_mm_single_kernel, dnums)
        scratch_shapes = ()
    elif out_dtype == jnp.float32:
        kernel = functools.partial(_mm_acc_into_out_kernel, dnums)
        scratch_shapes = ()
    else:
        kernel = functools.partial(_mm_acc_scratch_kernel, dnums)
        scratch_shapes = (pltpu.VMEM((tm, tn), jnp.float32),)

    in_bytes = jnp.dtype(in_dtype).itemsize
    out_bytes = jnp.dtype(out_dtype).itemsize
    cost = pl.CostEstimate(
        flops=2 * M * N * K,
        transcendentals=0,
        # Real HBM traffic: A re-read once per N tile, B once per M tile.
        bytes_accessed=(gn * M * Kp + gm * Kp * N) * in_bytes
        + M * N * out_bytes,
    )

    return pl.pallas_call(
        kernel,
        out_shape=jax.ShapeDtypeStruct((M, N), out_dtype),  # exact: no slice pass
        grid_spec=pltpu.PrefetchScalarGridSpec(
            num_scalar_prefetch=0,
            grid=grid,
            in_specs=[
                pl.BlockSpec(a_block, a_map),
                pl.BlockSpec(b_block, b_map),
            ],
            out_specs=pl.BlockSpec((tm, tn), lambda i, j, k: (i, j)),
            scratch_shapes=scratch_shapes,
        ),
        compiler_params=pltpu.CompilerParams(
            dimension_semantics=("parallel", "parallel", "arbitrary"),
            vmem_limit_bytes=cfg["vmem_limit"],
        ),
        cost_estimate=cost,
    )(x, y)


def matmul_module(x, y, layout: str):
    """Mirrors hidet.testing Matmul.forward for 2-D operands (layout in-kernel)."""
    # TODO(synk): batched (>2-D) torch.matmul broadcasting not implemented; would
    # add a leading (squeezed) batch grid axis.
    return pallas_matmul(x, y, layout)


if __name__ == "__main__":
    key = jax.random.PRNGKey(0)
    kx, ky = jax.random.split(key)

    def ref_matmul(x, y, layout):
        xr = jnp.swapaxes(x, -1, -2) if layout[0] == "T" else x
        yr = jnp.swapaxes(y, -1, -2) if layout[1] == "T" else y
        return xr @ yr

    def rel_err(out, ref):
        return float(jnp.max(jnp.abs(out - ref)) / (jnp.max(jnp.abs(ref)) + 1e-6))

    cases = [
        (128, 256, 128),   # aligned small case: K collapses -> single-step kernel
        (96, 200, 72),     # ragged M/N/K: partial blocks, no pad / no output slice
        (640, 2304, 384),  # large K: multi-step accumulate-into-output + M split
    ]

    ok = True
    for (M, K, N) in cases:
        for layout in ("NN", "NT", "TN", "TT"):
            x_shape = (M, K) if layout[0] == "N" else (K, M)
            y_shape = (K, N) if layout[1] == "N" else (N, K)
            x = jax.random.normal(kx, x_shape, dtype=jnp.float32)
            y = jax.random.normal(ky, y_shape, dtype=jnp.float32)

            out = jax.block_until_ready(matmul_module(x, y, layout))
            ref = ref_matmul(x, y, layout)
            if out.shape != ref.shape or rel_err(out, ref) > 2e-2:
                ok = False
                print(f"MISMATCH f32 M={M} K={K} N={N} layout={layout}")

    # Opt-in bf16 MXU path (f32 accumulation); compare against the same
    # bf16-quantized inputs multiplied in f32 (only accumulation order differs).
    M, K, N = 256, 512, 256
    for layout in ("NN", "TT"):
        x_shape = (M, K) if layout[0] == "N" else (K, M)
        y_shape = (K, N) if layout[1] == "N" else (N, K)
        x = jax.random.normal(kx, x_shape, dtype=jnp.float32)
        y = jax.random.normal(ky, y_shape, dtype=jnp.float32)

        out = jax.block_until_ready(pallas_matmul(x, y, layout, cast_to_bf16=True))
        xb = x.astype(jnp.bfloat16).astype(jnp.float32)
        yb = y.astype(jnp.bfloat16).astype(jnp.float32)
        ref = ref_matmul(xb, yb, layout)
        if out.shape != ref.shape or rel_err(out, ref) > 3e-2:
            ok = False
            print(f"MISMATCH bf16 M={M} K={K} N={N} layout={layout}")

    if ok:
        print("KERNEL_OK")
</pallas_src>

<mosaic_0001>
module attributes {stable_mosaic.version = 11 : i64} {
  func.func @_mm_single_kernel(%arg0: i32, %arg1: i32, %arg2: i32, %arg3: memref<128x256xf32, #tpu.memory_space<vmem>>, %arg4: memref<256x128xf32, #tpu.memory_space<vmem>>, %arg5: memref<128x128xf32, #tpu.memory_space<vmem>>) attributes {dimension_semantics = [#tpu.dimension_semantics<parallel>, #tpu.dimension_semantics<parallel>, #tpu.dimension_semantics<arbitrary>], iteration_bounds = array<i64: 1, 1, 1>, scalar_prefetch = 0 : i64, scratch_operands = 0 : i64, tpu.core_type = #tpu.core_type<tc>, window_params = [{transform_indices = @transform_0, window_bounds = array<i64: 128, 256>}, {transform_indices = @transform_1, window_bounds = array<i64: 256, 128>}, {transform_indices = @transform_2, window_bounds = array<i64: 128, 128>}]} {
    %c0 = arith.constant 0 : index
    %c0_0 = arith.constant 0 : index
    %0 = vector.load %arg3[%c0, %c0_0] : memref<128x256xf32, #tpu.memory_space<vmem>>, vector<128x256xf32>
    %c0_1 = arith.constant 0 : index
    %c0_2 = arith.constant 0 : index
    %1 = vector.load %arg4[%c0_1, %c0_2] : memref<256x128xf32, #tpu.memory_space<vmem>>, vector<256x128xf32>
    %cst = arith.constant dense<0.000000e+00> : vector<128x128xf32>
    %2 = tpu.matmul %0, %1, %cst {dimension_numbers = #tpu.dot_dimension_numbers<[1], [0], [0], [1], [0, 0, 1, 1], [], []>} : vector<128x256xf32>, vector<256x128xf32>, vector<128x128xf32> -> vector<128x128xf32>
    %c0_3 = arith.constant 0 : index
    %c0_4 = arith.constant 0 : index
    %3 = vector.load %arg5[%c0_3, %c0_4] : memref<128x128xf32, #tpu.memory_space<vmem>>, vector<128x128xf32>
    tpu.vector_store %arg5[%c0_3, %c0_4], %2 {strides = array<i32>} : memref<128x128xf32, #tpu.memory_space<vmem>>, vector<128x128xf32>,
    return
  }
  func.func @transform_0(%arg0: i32, %arg1: i32, %arg2: i32) -> (i32, i32) {
    %c0_i32 = arith.constant 0 : i32
    return %arg0, %arg2 : i32, i32
  }
  func.func @transform_1(%arg0: i32, %arg1: i32, %arg2: i32) -> (i32, i32) {
    %c0_i32 = arith.constant 0 : i32
    return %arg2, %arg1 : i32, i32
  }
  func.func @transform_2(%arg0: i32, %arg1: i32, %arg2: i32) -> (i32, i32) {
    %c0_i32 = arith.constant 0 : i32
    return %arg0, %arg1 : i32, i32
  }
}

</mosaic_0001>

<llo_original>
// kernel: tpu_custom_call.1
$region0: #{tpu_custom_call.1}
  #allocation0 [shape = 'u32[]', space=smem, size = 0x4, offset = 0x4, fixed_abs, tag = 'smem constant byte address 0x4 - core index']
  #allocation1 [shape = 'u32[144,128]{1,0:T(1,128)}', space=vmem, size = 0x12000, scoped, tag = 'internal scratch']
  %s0 = inlined_call_operand.hbm [shape: f32[128,256], index: 0, kind: input, shape index: {}]
  %s1 = inlined_call_operand.hbm [shape: f32[256,128], index: 1, kind: input, shape index: {}]
  %s2 = inlined_call_operand.hbm [shape: f32[128,128], index: 2, kind: output, shape index: {}]
  %s3 = sld [smem:[#allocation0]]
  $region26: #{tpu_custom_call.1} parent=0
    _
  %s5 = ssub.s32 1, %s3
  %s6 = scalar_select 0, %s5, %s3
  $region1: #{tpu_custom_call.1} parent=0
    #allocation2 [shape = 'u8[131072]{0}', space=vmem, size = 0x20000, scoped, tag = 'input window, operand 0, single buffered']
    #allocation3 [shape = 's32[1]{0}', space=sflag, size = 0x4, scoped, tag = 'scoped memory for tpu_custom_call.1']
    #allocation4 [shape = 's32[1]{0}', space=sflag, size = 0x4, scoped, tag = 'scoped memory for tpu_custom_call.1']
    #allocation5 [shape = 'u8[131072]{0}', space=vmem, size = 0x20000, scoped, tag = 'input window, operand 1, single buffered']
    #allocation6 [shape = 's32[1]{0}', space=sflag, size = 0x4, scoped, tag = 'scoped memory for tpu_custom_call.1']
    #allocation7 [shape = 'u8[65536]{0}', space=vmem, size = 0x10000, scoped, tag = 'output window, operand 0, single buffered']
    %7 = vsyncpa [#allocation3], 0
    %8 = vsyncpa [#allocation6], 0
    %9 = vsyncpa [#allocation4], 0
    // Predicated region
    $region2: #{tpu_custom_call.1} parent=1 // pred_check
      _
    $region3: #{tpu_custom_call.1} parent=1 // pred_check_branch
      %11 = sbr.rel (0) target = $region5
    $region4: #{tpu_custom_call.1} parent=1 // pred_region
      %s13 = ssub.s32 4096, 4096
      %14 = vsyncadd [#allocation3], %s13
      %s15 = sshll.u32 [#allocation2], 4
      %s16 = int_to_ptr.vmem [resolvable:$true] %s15
      %21 = dma.hbm_to_vmem [thread:$0]  %s0, 4096, %s16, [#allocation3], 256, 256, 16
    $region5: #{tpu_custom_call.1} parent=1 // pred_fallthru
      _
    // Predicated region
    $region6: #{tpu_custom_call.1} parent=1 // pred_check
      _
    $region7: #{tpu_custom_call.1} parent=1 // pred_check_branch
      %23 = sbr.rel (0) target = $region9
    $region8: #{tpu_custom_call.1} parent=1 // pred_region
      %s25 = ssub.s32 4096, 4096
      %26 = vsyncadd [#allocation6], %s25
      %s27 = sshll.u32 [#allocation5], 4
      %s28 = int_to_ptr.vmem [resolvable:$true] %s27
      %33 = dma.hbm_to_vmem [thread:$0]  %s1, 4096, %s28, [#allocation6], 128, 128, 8
    $region9: #{tpu_custom_call.1} parent=1 // pred_fallthru
      _
    // Predicated region
    $region10: #{tpu_custom_call.1} parent=1 // pred_check
      _
    $region11: #{tpu_custom_call.1} parent=1 // pred_check_branch
      %35 = sbr.rel (0) target = $region13
    $region12: #{tpu_custom_call.1} parent=1 // pred_region
      %36 = dma.done [#allocation3], 4096
    $region13: #{tpu_custom_call.1} parent=1 // pred_fallthru
      _
    // Predicated region
    $region14: #{tpu_custom_call.1} parent=1 // pred_check
      _
    $region15: #{tpu_custom_call.1} parent=1 // pred_check_branch
      %38 = sbr.rel (0) target = $region17
    $region16: #{tpu_custom_call.1} parent=1 // pred_region
      %39 = dma.done [#allocation6], 4096
    $region17: #{tpu_custom_call.1} parent=1 // pred_fallthru
      _
    %v40 = vld [vmem:[#allocation2] sm:$0xff]
    %v41 = vld [vmem:[#allocation2 + $0x8] sm:$0xff]
    %v42 = vld [vmem:[#allocation2 + $0x10] sm:$0xff]
    %v43 = vld [vmem:[#allocation2 + $0x18] sm:$0xff]
    %v44 = vld [vmem:[#allocation2 + $0x20] sm:$0xff]
    %v45 = vld [vmem:[#allocation2 + $0x28] sm:$0xff]
    %v46 = vld [vmem:[#allocation2 + $0x30] sm:$0xff]
    %v47 = vld [vmem:[#allocation2 + $0x38] sm:$0xff]
    %v48 = vld [vmem:[#allocation2 + $0x40] sm:$0xff]
    %v49 = vld [vmem:[#allocation2 + $0x48] sm:$0xff]
    %v50 = vld [vmem:[#allocation2 + $0x50] sm:$0xff]
    %v51 = vld [vmem:[#allocation2 + $0x58] sm:$0xff]
    %v52 = vld [vmem:[#allocation2 + $0x60] sm:$0xff]
    %v53 = vld [vmem:[#allocation2 + $0x68] sm:$0xff]
    %v54 = vld [vmem:[#allocation2 + $0x70] sm:$0xff]
    %v55 = vld [vmem:[#allocation2 + $0x78] sm:$0xff]
    %v56 = vld [vmem:[#allocation2 + $0x80] sm:$0xff]
    %v57 = vld [vmem:[#allocation2 + $0x88] sm:$0xff]
    %v58 = vld [vmem:[#allocation2 + $0x90] sm:$0xff]
    %v59 = vld [vmem:[#allocation2 + $0x98] sm:$0xff]
    %v60 = vld [vmem:[#allocation2 + $0xa0] sm:$0xff]
    %v61 = vld [vmem:[#allocation2 + $0xa8] sm:$0xff]
    %v62 = vld [vmem:[#allocation2 + $0xb0] sm:$0xff]
    %v63 = vld [vmem:[#allocation2 + $0xb8] sm:$0xff]
    %v64 = vld [vmem:[#allocation2 + $0xc0] sm:$0xff]
    %v65 = vld [vmem:[#allocation2 + $0xc8] sm:$0xff]
    %v66 = vld [vmem:[#allocation2 + $0xd0] sm:$0xff]
    %v67 = vld [vmem:[#allocation2 + $0xd8] sm:$0xff]
    %v68 = vld [vmem:[#allocation2 + $0xe0] sm:$0xff]
    %v69 = vld [vmem:[#allocation2 + $0xe8] sm:$0xff]
    %v70 = vld [vmem:[#allocation2 + $0xf0] sm:$0xff]
    %v71 = vld [vmem:[#allocation2 + $0xf8] sm:$0xff]
    %v72 = vld [vmem:[#allocation5] sm:$0xff]
    %v73 = vld [vmem:[#allocation5 + $0x8] sm:$0xff]
    %v74 = vld [vmem:[#allocation5 + $0x10] sm:$0xff]
    %v75 = vld [vmem:[#allocation5 + $0x18] sm:$0xff]
    %v76 = vld [vmem:[#allocation5 + $0x20] sm:$0xff]
    %v77 = vld [vmem:[#allocation5 + $0x28] sm:$0xff]
    %v78 = vld [vmem:[#allocation5 + $0x30] sm:$0xff]
    %v79 = vld [vmem:[#allocation5 + $0x38] sm:$0xff]
    %v80 = vld [vmem:[#allocation5 + $0x40] sm:$0xff]
    %v81 = vld [vmem:[#allocation5 + $0x48] sm:$0xff]
    %v82 = vld [vmem:[#allocation5 + $0x50] sm:$0xff]
    %v83 = vld [vmem:[#allocation5 + $0x58] sm:$0xff]
    %v84 = vld [vmem:[#allocation5 + $0x60] sm:$0xff]
    %v85 = vld [vmem:[#allocation5 + $0x68] sm:$0xff]
    %v86 = vld [vmem:[#allocation5 + $0x70] sm:$0xff]
    %v87 = vld [vmem:[#allocation5 + $0x78] sm:$0xff]
    %v88 = vld [vmem:[#allocation5 + $0x80] sm:$0xff]
    %v89 = vld [vmem:[#allocation5 + $0x88] sm:$0xff]
    %v90 = vld [vmem:[#allocation5 + $0x90] sm:$0xff]
    %v91 = vld [vmem:[#allocation5 + $0x98] sm:$0xff]
    %v92 = vld [vmem:[#allocation5 + $0xa0] sm:$0xff]
    %v93 = vld [vmem:[#allocation5 + $0xa8] sm:$0xff]
    %v94 = vld [vmem:[#allocation5 + $0xb0] sm:$0xff]
    %v95 = vld [vmem:[#allocation5 + $0xb8] sm:$0xff]
    %v96 = vld [vmem:[#allocation5 + $0xc0] sm:$0xff]
    %v97 = vld [vmem:[#allocation5 + $0xc8] sm:$0xff]
    %v98 = vld [vmem:[#allocation5 + $0xd0] sm:$0xff]
    %v99 = vld [vmem:[#allocation5 + $0xd8] sm:$0xff]
    %v100 = vld [vmem:[#allocation5 + $0xe0] sm:$0xff]
    %v101 = vld [vmem:[#allocation5 + $0xe8] sm:$0xff]
    %v102 = vld [vmem:[#allocation5 + $0xf0] sm:$0xff]
    %v103 = vld [vmem:[#allocation5 + $0xf8] sm:$0xff]
    %104 = vmatprep.subr.mxu0 0.0
    %105 = vmatpush1.msra.mxu0 %v87
    %106 = vmatprep.subr.mxu0 0.0
    %107 = vmatpush1.msra.mxu0 %v86
    %108 = vmatprep.subr.mxu0 0.0
    %109 = vmatpush1.msra.mxu0 %v85
    %110 = vmatprep.subr.mxu0 0.0
    %111 = vmatpush1.msra.mxu0 %v84
    %112 = vmatprep.subr.mxu0 0.0
    %113 = vmatpush1.msra.mxu0 %v83
    %114 = vmatprep.subr.mxu0 0.0
    %115 = vmatpush1.msra.mxu0 %v82
    %116 = vmatprep.subr.mxu0 0.0
    %117 = vmatpush1.msra.mxu0 %v81
    %118 = vmatprep.subr.mxu0 0.0
    %119 = vmatpush1.msra.mxu0 %v80
    %120 = vmatprep.subr.mxu0 0.0
    %121 = vmatpush1.msra.mxu0 %v79
    %122 = vmatprep.subr.mxu0 0.0
    %123 = vmatpush1.msra.mxu0 %v78
    %124 = vmatprep.subr.mxu0 0.0
    %125 = vmatpush1.msra.mxu0 %v77
    %126 = vmatprep.subr.mxu0 0.0
    %127 = vmatpush1.msra.mxu0 %v76
    %128 = vmatprep.subr.mxu0 0.0
    %129 = vmatpush1.msra.mxu0 %v75
    %130 = vmatprep.subr.mxu0 0.0
    %131 = vmatpush1.msra.mxu0 %v74
    %132 = vmatprep.subr.mxu0 0.0
    %133 = vmatpush1.msra.mxu0 %v73
    %134 = vmatprep.subr.mxu0 0.0
    %135 = vmatpush1.msra.mxu0 %v72
    %136 = vmatprep.subr.mxu0 0.0
    %137 = vmatpush2.msra.mxu0 %v103
    %138 = vmatprep.subr.mxu0 0.0
    %139 = vmatpush2.msra.mxu0 %v102
    %140 = vmatprep.subr.mxu0 0.0
    %141 = vmatpush2.msra.mxu0 %v101
    %142 = vmatprep.subr.mxu0 0.0
    %143 = vmatpush2.msra.mxu0 %v100
    %144 = vmatprep.subr.mxu0 0.0
    %145 = vmatpush2.msra.mxu0 %v99
    %146 = vmatprep.subr.mxu0 0.0
    %147 = vmatpush2.msra.mxu0 %v98
    %148 = vmatprep.subr.mxu0 0.0
    %149 = vmatpush2.msra.mxu0 %v97
    %150 = vmatprep.subr.mxu0 0.0
    %151 = vmatpush2.msra.mxu0 %v96
    %152 = vmatprep.subr.mxu0 0.0
    %153 = vmatpush2.msra.mxu0 %v95
    %154 = vmatprep.subr.mxu0 0.0
    %155 = vmatpush2.msra.mxu0 %v94
    %156 = vmatprep.subr.mxu0 0.0
    %157 = vmatpush2.msra.mxu0 %v93
    %158 = vmatprep.subr.mxu0 0.0
    %159 = vmatpush2.msra.mxu0 %v92
    %160 = vmatprep.subr.mxu0 0.0
    %161 = vmatpush2.msra.mxu0 %v91
    %162 = vmatprep.subr.mxu0 0.0
    %163 = vmatpush2.msra.mxu0 %v90
    %164 = vmatprep.subr.mxu0 0.0
    %165 = vmatpush2.msra.mxu0 %v89
    %166 = vmatprep.subr.mxu0 0.0
    %167 = vmatpush2.msra.mxu0 %v88
    %168 = vmatprep.mubr.f32.mxu0 %v41
    %169 = vmatmul.mubr.f32.gmra.mxu0 %v40
    %v170 = vpop.f32.mrf.mxu0
    %v171 = vadd.f32 0.0, %v170
    %v172 = vpop.f32.mrf.mxu0
    %173 = vmatprep.mubr.f32.mxu0 %v43
    %174 = vmatmul.mubr.f32.gmra.mxu0 %v42
    %v175 = vpop.f32.mrf.mxu0
    %v176 = vadd.f32 0.0, %v175
    %v177 = vpop.f32.mrf.mxu0
    %178 = vmatprep.mubr.f32.mxu0 %v45
    %179 = vmatmul.mubr.f32.gmra.mxu0 %v44
    %v180 = vpop.f32.mrf.mxu0
    %v181 = vadd.f32 0.0, %v180
    %v182 = vpop.f32.mrf.mxu0
    %183 = vmatprep.mubr.f32.mxu0 %v47
    %184 = vmatmul.mubr.f32.gmra.mxu0 %v46
    %v185 = vpop.f32.mrf.mxu0
    %v186 = vadd.f32 0.0, %v185
    %v187 = vpop.f32.mrf.mxu0
    %188 = vmatprep.mubr.f32.mxu0 %v49
    %189 = vmatmul.mubr.f32.gmra.mxu0 %v48
    %v190 = vpop.f32.mrf.mxu0
    %v191 = vadd.f32 0.0, %v190
    %v192 = vpop.f32.mrf.mxu0
    %193 = vmatprep.mubr.f32.mxu0 %v51
    %194 = vmatmul.mubr.f32.gmra.mxu0 %v50
    %v195 = vpop.f32.mrf.mxu0
    %v196 = vadd.f32 0.0, %v195
    %v197 = vpop.f32.mrf.mxu0
    %198 = vmatprep.mubr.f32.mxu0 %v53
    %199 = vmatmul.mubr.f32.gmra.mxu0 %v52
    %v200 = vpop.f32.mrf.mxu0
    %v201 = vadd.f32 0.0, %v200
    %v202 = vpop.f32.mrf.mxu0
    %203 = vmatprep.mubr.f32.mxu0 %v55
    %204 = vmatmul.mubr.f32.gmra.mxu0 %v54
    %v205 = vpop.f32.mrf.mxu0
    %v206 = vadd.f32 0.0, %v205
    %v207 = vpop.f32.mrf.mxu0
    %208 = vmatprep.mubr.f32.mxu0 %v57
    %209 = vmatmul.mubr.f32.gmra.mxu0 %v56
    %v210 = vpop.f32.mrf.mxu0
    %v211 = vadd.f32 0.0, %v210
    %v212 = vpop.f32.mrf.mxu0
    %213 = vmatprep.mubr.f32.mxu0 %v59
    %214 = vmatmul.mubr.f32.gmra.mxu0 %v58
    %v215 = vpop.f32.mrf.mxu0
    %v216 = vadd.f32 0.0, %v215
    %v217 = vpop.f32.mrf.mxu0
    %218 = vmatprep.mubr.f32.mxu0 %v61
    %219 = vmatmul.mubr.f32.gmra.mxu0 %v60
    %v220 = vpop.f32.mrf.mxu0
    %v221 = vadd.f32 0.0, %v220
    %v222 = vpop.f32.mrf.mxu0
    %223 = vmatprep.mubr.f32.mxu0 %v63
    %224 = vmatmul.mubr.f32.gmra.mxu0 %v62
    %v225 = vpop.f32.mrf.mxu0
    %v226 = vadd.f32 0.0, %v225
    %v227 = vpop.f32.mrf.mxu0
    %228 = vmatprep.mubr.f32.mxu0 %v65
    %229 = vmatmul.mubr.f32.gmra.mxu0 %v64
    %v230 = vpop.f32.mrf.mxu0
    %v231 = vadd.f32 0.0, %v230
    %v232 = vpop.f32.mrf.mxu0
    %233 = vmatprep.mubr.f32.mxu0 %v67
    %234 = vmatmul.mubr.f32.gmra.mxu0 %v66
    %v235 = vpop.f32.mrf.mxu0
    %v236 = vadd.f32 0.0, %v235
    %v237 = vpop.f32.mrf.mxu0
    %238 = vmatprep.mubr.f32.mxu0 %v69
    %239 = vmatmul.mubr.f32.gmra.mxu0 %v68
    %v240 = vpop.f32.mrf.mxu0
    %v241 = vadd.f32 0.0, %v240
    %v242 = vpop.f32.mrf.mxu0
    %243 = vmatprep.mubr.f32.mxu0 %v71
    %244 = vmatmul.mubr.f32.gmra.mxu0 %v70
    %v245 = vpop.f32.mrf.mxu0
    %v246 = vadd.f32 0.0, %v245
    %v247 = vpop.f32.mrf.mxu0
    %248 = vdwg.mxu0
    %249 = vst [vmem:[#allocation7] sm:$0xff] %v171
    %250 = vst [vmem:[#allocation7 + $0x8] sm:$0xff] %v176
    %251 = vst [vmem:[#allocation7 + $0x10] sm:$0xff] %v181
    %252 = vst [vmem:[#allocation7 + $0x18] sm:$0xff] %v186
    %253 = vst [vmem:[#allocation7 + $0x20] sm:$0xff] %v191
    %254 = vst [vmem:[#allocation7 + $0x28] sm:$0xff] %v196
    %255 = vst [vmem:[#allocation7 + $0x30] sm:$0xff] %v201
    %256 = vst [vmem:[#allocation7 + $0x38] sm:$0xff] %v206
    %257 = vst [vmem:[#allocation7 + $0x40] sm:$0xff] %v211
    %258 = vst [vmem:[#allocation7 + $0x48] sm:$0xff] %v216
    %259 = vst [vmem:[#allocation7 + $0x50] sm:$0xff] %v221
    %260 = vst [vmem:[#allocation7 + $0x58] sm:$0xff] %v226
    %261 = vst [vmem:[#allocation7 + $0x60] sm:$0xff] %v231
    %262 = vst [vmem:[#allocation7 + $0x68] sm:$0xff] %v236
    %263 = vst [vmem:[#allocation7 + $0x70] sm:$0xff] %v241
    %264 = vst [vmem:[#allocation7 + $0x78] sm:$0xff] %v246
    // Predicated region
    $region18: #{tpu_custom_call.1} parent=1 // pred_check
      _
    $region19: #{tpu_custom_call.1} parent=1 // pred_check_branch
      %266 = sbr.rel (0) target = $region21
    $region20: #{tpu_custom_call.1} parent=1 // pred_region
      %s268 = ssub.s32 2048, 2048
      %269 = vsyncadd [#allocation4], %s268
      %s270 = sshll.u32 [#allocation7], 4
      %s271 = int_to_ptr.vmem [resolvable:$true] %s270
      %276 = dma.vmem_to_hbm [thread:$0]  %s271, 2048, %s2, [#allocation4], 128, 128, 8
    $region21: #{tpu_custom_call.1} parent=1 // pred_fallthru
      _
    // Predicated region
    $region22: #{tpu_custom_call.1} parent=1 // pred_check
      _
    $region23: #{tpu_custom_call.1} parent=1 // pred_check_branch
      %278 = sbr.rel (0) target = $region25
    $region24: #{tpu_custom_call.1} parent=1 // pred_region
      %279 = dma.done [#allocation4], 2048
    $region25: #{tpu_custom_call.1} parent=1 // pred_fallthru
      _
    %280 = vsyncpa [#allocation3], 1
    %281 = vsyncpa [#allocation6], 1
    %282 = vsyncpa [#allocation4], 1

</llo_original>
